<compile_context>
chip_gen: v6e
topology: v6e:2x2x1
jax: 0.10.0
libtpu: 0.0.40
codegen_flags: <defaults>
</compile_context>

<pallas_src>
import jax
import jax.numpy as jnp
from jax.experimental import pallas as pl
from jax.experimental.pallas import tpu as pltpu


def _gap_head_kernel(x_ref, w_ref, b_ref, out_ref, acc_ref):
    """One (batch-tile, spatial-tile) grid step.

    x_ref  : (TB, C, THW)  spatial slice of the flattened input
    w_ref  : (C, DP)       fused head weights, pre-scaled by 1/(H*W)
    b_ref  : (1, DP)       fused bias (lane-padded to DP)
    out_ref: (TB, DP)      output tile (written only in the epilogue)
    acc_ref: (TB, C) f32   running spatial sum per (batch, channel)
    """
    k = pl.program_id(1)

    @pl.when(k == 0)
    def _init():
        acc_ref[...] = jnp.zeros_like(acc_ref)

    # Partial spatial sum for this tile; accumulate in f32 (plain VPU adds,
    # one cross-lane reduce per tile).
    x = x_ref[...].astype(jnp.float32)
    acc_ref[...] += jnp.sum(x, axis=-1)

    @pl.when(k == pl.num_programs(1) - 1)
    def _epilogue():
        # The 1/(H*W) mean is folded into w, so raw sums feed the matmul.
        gap = acc_ref[...]                                       # (TB, C)
        y = jnp.dot(gap, w_ref[...].astype(jnp.float32),
                    preferred_element_type=jnp.float32) + b_ref[...]
        out_ref[...] = y.astype(out_ref.dtype)


def _pick_spatial_tile(hw, tb, c, itemsize, vmem_budget_bytes=16 * 1024 * 1024):
    """Largest multiple-of-128 divisor of hw whose double-buffered x tile fits
    within a conservative VMEM budget (leaves headroom on v7x's 64 MiB VMEM)."""
    if hw % 128 != 0:
        return hw                      # fall back to one full-width block
    best = None
    d = 128
    while d <= hw:
        if hw % d == 0 and 2 * tb * c * d * itemsize <= vmem_budget_bytes:
            best = d
        d += 128
    return best if best is not None else 128


def side_tuning_forward(x_nchw, wb, bb, ws=None, bs=None, *,
                        use_side=True, tb=None, thw=None):
    """Pallas forward for SideTuningBackbone.

    x_nchw : (B, C, H, W)
    wb, bb : backbone head params  (C, DB), (DB,)
    ws, bs : side-net head params  (C, DS), (DS,)   (only if use_side)
    """
    B, C, H, W = x_nchw.shape
    HW = H * W
    x = x_nchw.reshape(B, C, HW)

    # --- Fuse both heads in the wrapper: one matmul, one lane-dense store ---
    if use_side:
        w_fused = jnp.concatenate([wb, ws], axis=1)              # (C, DB+DS)
        b_fused = jnp.concatenate([bb, bs], axis=0)              # (DB+DS,)
    else:
        w_fused, b_fused = wb, bb
    D = w_fused.shape[1]

    # Lane-dense output: pad feature dim up to a multiple of 128.
    DP = max(128, ((D + 127) // 128) * 128)
    if DP != D:
        w_fused = jnp.pad(w_fused, ((0, 0), (0, DP - D)))
        b_fused = jnp.pad(b_fused, (0, DP - D))
    # Fold the 1/(H*W) GAP mean into the weights.
    w_fused = w_fused.astype(jnp.float32) / float(HW)
    b_fused = b_fused.reshape(1, DP).astype(jnp.float32)

    # --- Tile selection ---
    if tb is None:
        tb = B                         # batch tile; must divide B
    assert B % tb == 0, (B, tb)
    if thw is None:
        thw = _pick_spatial_tile(HW, tb, C, x.dtype.itemsize)
    assert HW % thw == 0, (HW, thw)
    grid = (B // tb, HW // thw)        # spatial reduction axis trailing

    out = pl.pallas_call(
        _gap_head_kernel,
        out_shape=jax.ShapeDtypeStruct((B, DP), jnp.float32),
        grid=grid,
        in_specs=[
            # x streamed tile-by-tile along the spatial (reduction) axis.
            pl.BlockSpec((tb, C, thw), lambda i, k: (i, 0, k)),
            # Weights / bias: constant block index across the reduction axis
            # -> DMA'd once, resident in VMEM.
            pl.BlockSpec((C, DP), lambda i, k: (0, 0)),
            pl.BlockSpec((1, DP), lambda i, k: (0, 0)),
        ],
        out_specs=pl.BlockSpec((tb, DP), lambda i, k: (i, 0)),
        scratch_shapes=[pltpu.VMEM((tb, C), jnp.float32)],
        compiler_params=pltpu.CompilerParams(
            dimension_semantics=("parallel", "arbitrary")),
    )(x, w_fused, b_fused)

    return out[:, :D] if DP != D else out


def _reference(x_nchw, wb, bb, ws, bs, use_side=True):
    gap = jnp.mean(x_nchw.astype(jnp.float32), axis=(2, 3))      # (B, C)
    y1 = gap @ wb + bb
    if not use_side:
        return y1
    y2 = gap @ ws + bs
    return jnp.concatenate([y1, y2], axis=-1)


if __name__ == "__main__":
    key = jax.random.PRNGKey(0)
    kx, kwb, kbb, kws, kbs = jax.random.split(key, 5)

    # Small shapes consistent with the module's forward.
    B, C, H, W = 2, 4, 16, 16
    DB = 32          # backbone feature dim
    DS = 256         # swin_et(num_classes=256)

    x = jax.random.normal(kx, (B, C, H, W), dtype=jnp.float32)
    wb = jax.random.normal(kwb, (C, DB), dtype=jnp.float32) * 0.1
    bb = jax.random.normal(kbb, (DB,), dtype=jnp.float32) * 0.1
    ws = jax.random.normal(kws, (C, DS), dtype=jnp.float32) * 0.1
    bs = jax.random.normal(kbs, (DS,), dtype=jnp.float32) * 0.1

    # Path after .reset(): backbone + side net, concatenated on dim=-1.
    # thw=128 forces a 2-step spatial reduction to exercise the grid pipeline.
    out = side_tuning_forward(x, wb, bb, ws, bs, use_side=True, thw=128)
    out = jax.block_until_ready(out)
    ref = _reference(x, wb, bb, ws, bs, use_side=True)
    assert out.shape == (B, DB + DS), out.shape
    assert jnp.allclose(out, ref, atol=1e-4, rtol=1e-4)

    # Path before .reset(): backbone only (auto tile selection).
    out_b = side_tuning_forward(x, wb, bb, use_side=False)
    out_b = jax.block_until_ready(out_b)
    ref_b = _reference(x, wb, bb, ws, bs, use_side=False)
    assert out_b.shape == (B, DB), out_b.shape
    assert jnp.allclose(out_b, ref_b, atol=1e-4, rtol=1e-4)

    # TODO(synk): the real backbone / swin_et side network are injected
    # nn.Modules; they are represented here by GAP + Linear heads.
    print("KERNEL_OK")
</pallas_src>

<mosaic_0001>
module attributes {stable_mosaic.version = 11 : i64} {
  func.func @_gap_head_kernel(%arg0: i32, %arg1: i32, %arg2: memref<2x4x128xf32, #tpu.memory_space<vmem>>, %arg3: memref<4x384xf32, #tpu.memory_space<vmem>>, %arg4: memref<1x384xf32, #tpu.memory_space<vmem>>, %arg5: memref<2x384xf32, #tpu.memory_space<vmem>>, %arg6: memref<2x4xf32, #tpu.memory_space<vmem>>) attributes {dimension_semantics = [#tpu.dimension_semantics<parallel>, #tpu.dimension_semantics<arbitrary>], iteration_bounds = array<i64: 1, 2>, scalar_prefetch = 0 : i64, scratch_operands = 1 : i64, tpu.core_type = #tpu.core_type<tc>, window_params = [{transform_indices = @transform_0, window_bounds = array<i64: 2, 4, 128>}, {pipeline_mode = #tpu.pipeline_mode<synchronous>, transform_indices = @transform_1, window_bounds = array<i64: 4, 384>}, {pipeline_mode = #tpu.pipeline_mode<synchronous>, transform_indices = @transform_2, window_bounds = array<i64: 1, 384>}, {transform_indices = @transform_3, window_bounds = array<i64: 2, 384>}]} {
    %c0_i32 = arith.constant 0 : i32
    %0 = arith.cmpi eq, %arg1, %c0_i32 : i32
    %1 = arith.extui %0 : i1 to i32
    %c0_i32_0 = arith.constant 0 : i32
    %2 = arith.cmpi ne, %1, %c0_i32_0 : i32
    scf.if %2 {
      %cst_8 = arith.constant 0.000000e+00 : f32
      %11 = vector.broadcast %cst_8 : f32 to vector<2x4xf32>
      %c0_9 = arith.constant 0 : index
      %c0_10 = arith.constant 0 : index
      %12 = vector.load %arg6[%c0_9, %c0_10] : memref<2x4xf32, #tpu.memory_space<vmem>>, vector<2x4xf32>
      tpu.vector_store %arg6[%c0_9, %c0_10], %11 {strides = array<i32>} : memref<2x4xf32, #tpu.memory_space<vmem>>, vector<2x4xf32>,
    } else {
    }
    %c0 = arith.constant 0 : index
    %c0_1 = arith.constant 0 : index
    %c0_2 = arith.constant 0 : index
    %3 = vector.load %arg2[%c0, %c0_1, %c0_2] : memref<2x4x128xf32, #tpu.memory_space<vmem>>, vector<2x4x128xf32>
    %c0_3 = arith.constant 0 : index
    %c0_4 = arith.constant 0 : index
    %4 = vector.load %arg6[%c0_3, %c0_4] : memref<2x4xf32, #tpu.memory_space<vmem>>, vector<2x4xf32>
    %cst = arith.constant dense<0.000000e+00> : vector<2x4xf32>
    %5 = vector.multi_reduction <add>, %3, %cst [2] : vector<2x4x128xf32> to vector<2x4xf32>
    %6 = arith.addf %4, %5 : vector<2x4xf32>
    %c0_5 = arith.constant 0 : index
    %c0_6 = arith.constant 0 : index
    %7 = vector.load %arg6[%c0_5, %c0_6] : memref<2x4xf32, #tpu.memory_space<vmem>>, vector<2x4xf32>
    tpu.vector_store %arg6[%c0_5, %c0_6], %6 {strides = array<i32>} : memref<2x4xf32, #tpu.memory_space<vmem>>, vector<2x4xf32>,
    %c1_i32 = arith.constant 1 : i32
    %8 = arith.cmpi eq, %arg1, %c1_i32 : i32
    %9 = arith.extui %8 : i1 to i32
    %c0_i32_7 = arith.constant 0 : i32
    %10 = arith.cmpi ne, %9, %c0_i32_7 : i32
    scf.if %10 {
      %c0_8 = arith.constant 0 : index
      %c0_9 = arith.constant 0 : index
      %11 = vector.load %arg6[%c0_8, %c0_9] : memref<2x4xf32, #tpu.memory_space<vmem>>, vector<2x4xf32>
      %c0_10 = arith.constant 0 : index
      %c0_11 = arith.constant 0 : index
      %12 = vector.load %arg3[%c0_10, %c0_11] : memref<4x384xf32, #tpu.memory_space<vmem>>, vector<4x384xf32>
      %cst_12 = arith.constant dense<0.000000e+00> : vector<2x384xf32>
      %13 = tpu.matmul %11, %12, %cst_12 {dimension_numbers = #tpu.dot_dimension_numbers<[1], [0], [0], [1], [0, 0, 1, 1], [], []>} : vector<2x4xf32>, vector<4x384xf32>, vector<2x384xf32> -> vector<2x384xf32>
      %c0_13 = arith.constant 0 : index
      %c0_14 = arith.constant 0 : index
      %14 = vector.load %arg4[%c0_13, %c0_14] : memref<1x384xf32, #tpu.memory_space<vmem>>, vector<1x384xf32>
      %15 = vector.broadcast %14 : vector<1x384xf32> to vector<2x384xf32>
      %16 = arith.addf %13, %15 : vector<2x384xf32>
      %c0_15 = arith.constant 0 : index
      %c0_16 = arith.constant 0 : index
      %17 = vector.load %arg5[%c0_15, %c0_16] : memref<2x384xf32, #tpu.memory_space<vmem>>, vector<2x384xf32>
      tpu.vector_store %arg5[%c0_15, %c0_16], %16 {strides = array<i32>} : memref<2x384xf32, #tpu.memory_space<vmem>>, vector<2x384xf32>,
    } else {
    }
    return
  }
  func.func @transform_0(%arg0: i32, %arg1: i32) -> (i32, i32, i32) {
    %c0_i32 = arith.constant 0 : i32
    %c0_i32_0 = arith.constant 0 : i32
    return %arg0, %c0_i32, %arg1 : i32, i32, i32
  }
  func.func @transform_1(%arg0: i32, %arg1: i32) -> (i32, i32) {
    %c0_i32 = arith.constant 0 : i32
    %c0_i32_0 = arith.constant 0 : i32
    %c0_i32_1 = arith.constant 0 : i32
    return %c0_i32, %c0_i32_0 : i32, i32
  }
  func.func @transform_2(%arg0: i32, %arg1: i32) -> (i32, i32) {
    %c0_i32 = arith.constant 0 : i32
    %c0_i32_0 = arith.constant 0 : i32
    %c0_i32_1 = arith.constant 0 : i32
    return %c0_i32, %c0_i32_0 : i32, i32
  }
  func.func @transform_3(%arg0: i32, %arg1: i32) -> (i32, i32) {
    %c0_i32 = arith.constant 0 : i32
    %c0_i32_0 = arith.constant 0 : i32
    return %arg0, %c0_i32 : i32, i32
  }
}

</mosaic_0001>

<llo_original>
// kernel: tpu_custom_call.1
$region0: #{tpu_custom_call.1}
  #allocation0 [shape = 'u32[]', space=smem, size = 0x4, offset = 0x4, fixed_abs, tag = 'smem constant byte address 0x4 - core index']
  #allocation1 [shape = 'u32[144,128]{1,0:T(1,128)}', space=vmem, size = 0x12000, scoped, tag = 'internal scratch']
  #allocation2 [shape = 'f32[2,4]{1,0:T(2,128)}', space=vmem, size = 0x400, scoped, tag = 'scratch operand']
  %s0 = inlined_call_operand.hbm [shape: f32[2,4,256], index: 0, kind: input, shape index: {}]
  %s1 = inlined_call_operand.hbm [shape: f32[4,384], index: 1, kind: input, shape index: {}]
  %s2 = inlined_call_operand.vmem [shape: f32[1,384], index: 2, kind: input, shape index: {}]
  %s3 = inlined_call_operand.hbm [shape: f32[2,384], index: 3, kind: output, shape index: {}]
  %s4 = sld [smem:[#allocation0]]
  $region61: #{tpu_custom_call.1} parent=0
    _
  %s6 = ssub.s32 1, %s4
  %s7 = scalar_select 0, %s6, %s4
  $region1: #{tpu_custom_call.1} parent=0
    #allocation3 [shape = 'u8[8192]{0}', space=vmem, size = 0x2000, scoped, tag = 'input window, operand 0']
    #allocation4 [shape = 's32[2]{0}', space=sflag, size = 0x8, scoped, tag = 'scoped memory for tpu_custom_call.1']
    #allocation5 [shape = 's32[2]{0}', space=sflag, size = 0x8, scoped, tag = 'scoped memory for tpu_custom_call.1']
    #allocation6 [shape = 'u8[6144]{0}', space=vmem, size = 0x1800, scoped, tag = 'input window, operand 1, single buffered']
    #allocation7 [shape = 's32[1]{0}', space=sflag, size = 0x4, scoped, tag = 'scoped memory for tpu_custom_call.1']
    #allocation8 [shape = 'u8[3072]{0}', space=vmem, size = 0xc00, scoped, tag = 'output window, operand 0, single buffered']
    %8 = vsyncpa [#allocation4], 0
    %s9 = scalar_lea.sflag [#allocation4], 1
    %10 = vsyncpa %s9, 0
    %11 = vsyncpa [#allocation7], 0
    %12 = vsyncpa [#allocation5], 0
    loop: start=0, step=1, limit=4
    $region2: #{tpu_custom_call.1} parent=1 // loop_pre_header
      _
    $region3: #{tpu_custom_call.1} parent=1 // loop_header
      %s14 = sphi 0, %s18
      %p15 = scmp.ge.s32.totalorder %s14, 4
      %s21 = sphi 0, %s33
      %s22 = sphi 0, %s29
      %s23 = sphi 0, %s21
      %s24 = sphi 0, %s22
      %s25 = sphi 0, %s23
      %s26 = sphi 0, %s24
      %s38 = sphi 0, %s40
      %s41 = sphi 0, %s38
      %s42 = sphi 0, %s41
      %s58 = sphi 0, %s42
      %s62 = sphi 0, %s62
      %s64 = sphi 0, %s62
      %s65 = sphi 0, %s64
      %s79 = sphi 0, %s65
      %s83 = sphi 0, %s83
      %s85 = sphi 0, %s83
      %s86 = sphi 0, %s85
      %s100 = sphi 0, %s86
      %s106 = sphi 0, %s108
      %s109 = sphi 0, %s106
      %s110 = sphi 0, %s109
      %s126 = sphi 0, %s110
    $region4: #{tpu_custom_call.1} parent=1 // loop_header_branch
      %17 = sbr.rel (%p15) target = $region8
    $region5: #{tpu_custom_call.1} parent=1 // loop_body
      %s19 = ssub.s32 %s14, 1
      %s20 = ssub.s32 %s14, 2
      %s27 = sadd.s32 1, %s22
      %p28 = scmp.ge.s32.totalorder %s27, 2
      %s29 = scalar_select %p28, 0, %s27
      %s30 = sadd.s32 1, %s21
      %s31 = scalar_select %p28, %s30, %s21
      %p32 = scmp.ge.s32.totalorder %s31, 1
      %s33 = scalar_select %p32, 0, %s31
      %s34 = ssub.s32 %s21, %s33
      %s35 = ssub.s32 %s22, %s29
      %s36 = sor.u32 %s34, %s35
      %p37 = scmp.eq.s32.totalorder %s36, 0
      %s39 = sadd.s32 %s38, 1
      %s40 = scalar_select %p37, %s38, %s39
      %p43 = pneg %p37
      %p44 = scmp.eq.s32.totalorder %s14, 1
      %p45 = por %p43, %p44
      %p46 = scmp.ne.s32.totalorder %s38, %s41
      %p47 = scmp.eq.s32.totalorder %s14, 0
      %p48 = por %p46, %p47
      %p49 = scmp.ne.s32.totalorder %s38, %s41
      %p50 = scmp.eq.s32.totalorder %s19, 1
      %p51 = por %p49, %p50
      %p52 = scmp.ne.s32.totalorder %s41, %s42
      %p53 = scmp.eq.s32.totalorder %s19, 0
      %p54 = por %p52, %p53
      %p55 = scmp.ne.s32.totalorder %s41, %s42
      %p56 = scmp.eq.s32.totalorder %s20, 1
      %p57 = por %p55, %p56
      %p59 = scmp.ne.s32.totalorder %s42, %s58
      %p60 = scmp.eq.s32.totalorder %s20, 0
      %p61 = por %p59, %p60
      %s63 = sadd.s32 %s62, 1
      %p66 = scmp.eq.s32.totalorder %s14, 1
      %p67 = scmp.ne.s32.totalorder %s62, %s64
      %p68 = scmp.eq.s32.totalorder %s14, 0
      %p69 = por %p67, %p68
      %p70 = scmp.ne.s32.totalorder %s62, %s64
      %p71 = scmp.eq.s32.totalorder %s19, 1
      %p72 = por %p70, %p71
      %p73 = scmp.ne.s32.totalorder %s64, %s65
      %p74 = scmp.eq.s32.totalorder %s19, 0
      %p75 = por %p73, %p74
      %p76 = scmp.ne.s32.totalorder %s64, %s65
      %p77 = scmp.eq.s32.totalorder %s20, 1
      %p78 = por %p76, %p77
      %p80 = scmp.ne.s32.totalorder %s65, %s79
      %p81 = scmp.eq.s32.totalorder %s20, 0
      %p82 = por %p80, %p81
      %s84 = sadd.s32 %s83, 1
      %p87 = scmp.eq.s32.totalorder %s14, 1
      %p88 = scmp.ne.s32.totalorder %s83, %s85
      %p89 = scmp.eq.s32.totalorder %s14, 0
      %p90 = por %p88, %p89
      %p91 = scmp.ne.s32.totalorder %s83, %s85
      %p92 = scmp.eq.s32.totalorder %s19, 1
      %p93 = por %p91, %p92
      %p94 = scmp.ne.s32.totalorder %s85, %s86
      %p95 = scmp.eq.s32.totalorder %s19, 0
      %p96 = por %p94, %p95
      %p97 = scmp.ne.s32.totalorder %s85, %s86
      %p98 = scmp.eq.s32.totalorder %s20, 1
      %p99 = por %p97, %p98
      %p101 = scmp.ne.s32.totalorder %s86, %s100
      %p102 = scmp.eq.s32.totalorder %s20, 0
      %p103 = por %p101, %p102
      %s104 = ssub.s32 %s21, %s33
      %p105 = scmp.eq.s32.totalorder %s104, 0
      %s107 = sadd.s32 %s106, 1
      %s108 = scalar_select %p105, %s106, %s107
      %p111 = pneg %p105
      %p112 = scmp.eq.s32.totalorder %s14, 1
      %p113 = por %p111, %p112
      %p114 = scmp.ne.s32.totalorder %s106, %s109
      %p115 = scmp.eq.s32.totalorder %s14, 0
      %p116 = por %p114, %p115
      %p117 = scmp.ne.s32.totalorder %s106, %s109
      %p118 = scmp.eq.s32.totalorder %s19, 1
      %p119 = por %p117, %p118
      %p120 = scmp.ne.s32.totalorder %s109, %s110
      %p121 = scmp.eq.s32.totalorder %s19, 0
      %p122 = por %p120, %p121
      %p123 = scmp.ne.s32.totalorder %s109, %s110
      %p124 = scmp.eq.s32.totalorder %s20, 1
      %p125 = por %p123, %p124
      %p127 = scmp.ne.s32.totalorder %s110, %s126
      %p128 = scmp.eq.s32.totalorder %s20, 0
      %p129 = por %p127, %p128
      %p130 = scmp.le.s32.totalorder 1, %s14
      %p131 = scmp.lt.s32.totalorder %s14, 3
      %p132 = pnand %p130, %p131
      %p133 = pneg %p132
      // Predicated region
      $region9: #{tpu_custom_call.1} parent=5 // pred_check
        _
      $region10: #{tpu_custom_call.1} parent=5 // pred_check_branch
        %135 = sbr.rel (%p132) target = $region12
      $region11: #{tpu_custom_call.1} parent=5 // pred_region
        %s136 = ssub.s32 %s14, 1
        // Predicated region
        $region13: #{tpu_custom_call.1} parent=11 // pred_check
          %p137 = pneg %p75
        $region14: #{tpu_custom_call.1} parent=11 // pred_check_branch
          %139 = sbr.rel (%p137) target = $region16
        $region15: #{tpu_custom_call.1} parent=11 // pred_region
          %s141 = ssub.s32 192, 192
          %142 = vsyncadd [#allocation7], %s141
          %s144 = sshll.u32 [#allocation6], 4
          %s145 = int_to_ptr.vmem [resolvable:$true] %s144
          %147 = dma.hbm_to_vmem [thread:$0]  %s1, 192, %s145, [#allocation7]
        $region16: #{tpu_custom_call.1} parent=11 // pred_fallthru
          _
        // Predicated region
        $region17: #{tpu_custom_call.1} parent=11 // pred_check
          %p148 = pneg %p96
        $region18: #{tpu_custom_call.1} parent=11 // pred_check_branch
          %150 = sbr.rel (%p148) target = $region20
        $region19: #{tpu_custom_call.1} parent=11 // pred_region
          _
        $region20: #{tpu_custom_call.1} parent=11 // pred_fallthru
          _
      $region12: #{tpu_custom_call.1} parent=5 // pred_fallthru
        _
      %p151 = scmp.lt.s32.totalorder %s14, 2
      // Predicated region
      $region21: #{tpu_custom_call.1} parent=5 // pred_check
        %p152 = pneg %p151
      $region22: #{tpu_custom_call.1} parent=5 // pred_check_branch
        %154 = sbr.rel (%p152) target = $region24
      $region23: #{tpu_custom_call.1} parent=5 // pred_region
        // Predicated region
        $region25: #{tpu_custom_call.1} parent=23 // pred_check
          %p155 = pneg %p48
        $region26: #{tpu_custom_call.1} parent=23 // pred_check_branch
          %157 = sbr.rel (%p155) target = $region28
        $region27: #{tpu_custom_call.1} parent=23 // pred_region
          %s158 = sand.u32 %s38, 1
          %s159 = scalar_lea.sflag [#allocation4], %s158
          %s160 = sand.u32 %s38, 1
          %s161 = smul.addr %s160, 8
          %s162 = scalar_lea.vmem [#allocation3], %s161
          %s163 = smul.u32 2, %s21
          %s165 = ssub.s32 128, 128
          %166 = vsyncadd %s159, %s165
          %s167 = smul.addr %s163, 2
          %s168 = sadd.s32 %s22, %s167
          %s169 = smul.addr %s168, 64
          %s170 = scalar_lea.hbm %s0, %s169
          %s171 = sshll.u32 %s162, 4
          %s172 = int_to_ptr.vmem [resolvable:$true] %s171
          %177 = dma.hbm_to_vmem [thread:$0]  %s170, 128, %s172, %s159, 128, 64, 4
        $region28: #{tpu_custom_call.1} parent=23 // pred_fallthru
          _
      $region24: #{tpu_custom_call.1} parent=5 // pred_fallthru
        _
      %p178 = scmp.le.s32.totalorder 1, %s14
      %p179 = scmp.lt.s32.totalorder %s14, 3
      %p180 = pnand %p178, %p179
      %p181 = pneg %p180
      // Predicated region
      $region29: #{tpu_custom_call.1} parent=5 // pred_check
        _
      $region30: #{tpu_custom_call.1} parent=5 // pred_check_branch
        %183 = sbr.rel (%p180) target = $region32
      $region31: #{tpu_custom_call.1} parent=5 // pred_region
        %s184 = ssub.s32 %s14, 1
        %s185 = sand.u32 %s41, 1
        %s186 = scalar_lea.sflag [#allocation4], %s185
        %s187 = sand.u32 %s41, 1
        %s188 = smul.addr %s187, 8
        %s189 = scalar_lea.vmem [#allocation3], %s188
        // Predicated region
        $region33: #{tpu_custom_call.1} parent=31 // pred_check
          %p190 = pneg %p54
        $region34: #{tpu_custom_call.1} parent=31 // pred_check_branch
          %192 = sbr.rel (%p190) target = $region36
        $region35: #{tpu_custom_call.1} parent=31 // pred_region
          %193 = dma.done %s186, 128
        $region36: #{tpu_custom_call.1} parent=31 // pred_fallthru
          _
        // Predicated region
        $region37: #{tpu_custom_call.1} parent=31 // pred_check
          %p194 = pneg %p75
        $region38: #{tpu_custom_call.1} parent=31 // pred_check_branch
          %196 = sbr.rel (%p194) target = $region40
        $region39: #{tpu_custom_call.1} parent=31 // pred_region
          %197 = dma.done [#allocation7], 192
        $region40: #{tpu_custom_call.1} parent=31 // pred_fallthru
          _
        %s198 = sand.u32 %s41, 1
        %s199 = scalar_lea.sflag [#allocation4], %s198
        %s200 = sand.u32 %s41, 1
        %s201 = smul.addr %s200, 8
        %s202 = scalar_lea.vmem [#allocation3], %s201
        %p203 = pneg %p54
        %p204 = pneg %p51
        %p205 = pneg %p75
        %p206 = pneg %p72
        %p207 = pneg %p96
        %p208 = pneg %p93
        %p209 = pneg %p122
        %p210 = pneg %p119
        %s211 = smul.u32 2, %s23
        %p212 = scmp.eq.s32.totalorder %s24, 0
        // Predicated region
        $region41: #{tpu_custom_call.1} parent=31 // pred_check
          %p213 = pneg %p212
        $region42: #{tpu_custom_call.1} parent=31 // pred_check_branch
          %215 = sbr.rel (%p213) target = $region44
        $region43: #{tpu_custom_call.1} parent=31 // pred_region
          %vm216 = vcmask 25600
          %217 = vst.msk [vmem:[#allocation2] sm:$0x3] %vm216, 0.0
        $region44: #{tpu_custom_call.1} parent=31 // pred_fallthru
          _
        %v218 = vld [vmem:[%s189] sm:$0xf]
        %v219 = vld [vmem:[%s189 + $0x4] sm:$0xf]
        %v220 = vld [vmem:[#allocation2] sm:$0x3]
        %vm221 = vcmask 1043456
        %v222 = vsel %vm221, %v218, 0.0
        %223 = vadd.xlane.f32.xlu0 %v222
        %v224 = vpop.xlane.xlu0 %223
        %v225 = vsel %vm221, %v219, 0.0
        %226 = vadd.xlane.f32.xlu0 %v225
        %v227 = vpop.xlane.xlu0 %226
        %v230 = vlaneseq
        %v231 = vand.u32 %v230, 127
        %v232 = vlaneseq
        %v233 = vshrl.u32 %v232, 7
        %v234 = vsub.s32 %v231, %v233
        %v235 = vrot.slane %v224, %v234
        %v236 = vlaneseq
        %v237 = vshrl.u32 %v236, 7
        %v238 = vsub.s32 %v231, %v237
        %v239 = vrot.slane %v227, %v238
        %vm240 = vcmask 1041409
        %v241 = vsel %vm240, %v239, %v235
        %v243 = vadd.f32 %v220, %v241
        %vm244 = vcmask 25600
        %245 = vst.msk [vmem:[#allocation2] sm:$0x3] %vm244, %v243
        %p246 = scmp.eq.s32.totalorder %s24, 1
        // Predicated region
        $region45: #{tpu_custom_call.1} parent=31 // pred_check
          %p247 = pneg %p246
        $region46: #{tpu_custom_call.1} parent=31 // pred_check_branch
          %249 = sbr.rel (%p247) target = $region48
        $region47: #{tpu_custom_call.1} parent=31 // pred_region
          %v250 = vld [vmem:[#allocation2] sm:$0x3]
          %v251 = vld [vmem:[#allocation6] sm:$0xff]
          %v252 = vld [vmem:[#allocation6 + $0x8] sm:$0xf]
          %v253 = vld [vmem:[%s2] sm:$0x7]
          %v255 = vlaneseq
          %v256 = vshrl.u32 %v255, 7
          %v257 = vsub.s32 0, %v256
          %v258 = vrot.slane %v253, %v257
          %v259 = vlaneseq
          %v260 = vshrl.u32 %v259, 7
          %v261 = vsub.s32 1, %v260
          %v262 = vrot.slane %v253, %v261
          %v263 = vlaneseq
          %v264 = vshrl.u32 %v263, 7
          %v265 = vsub.s32 2, %v264
          %v266 = vrot.slane %v253, %v265
          %v272 = vcombine.high %v251, %v251
          %vm273 = vcmask 31744
          %v275 = vsel %vm273, %v250, 0
          %v277 = vsel %vm221, %v251, 0
          %v279 = vsel %vm221, %v272, 0
          %v281 = vsel %vm221, %v252, 0
          %283 = vmatprep.subr.mxu0 0.0
          %284 = vmatpush1.msra.mxu0 0.0
          %285 = vmatprep.subr.mxu0 0.0
          %286 = vmatpush1.msra.mxu0 0.0
          %287 = vmatprep.subr.mxu0 0.0
          %288 = vmatpush1.msra.mxu0 0.0
          %289 = vmatprep.subr.mxu0 0.0
          %290 = vmatpush1.msra.mxu0 0.0
          %291 = vmatprep.subr.mxu0 0.0
          %292 = vmatpush1.msra.mxu0 0.0
          %293 = vmatprep.subr.mxu0 0.0
          %294 = vmatpush1.msra.mxu0 0.0
          %295 = vmatprep.subr.mxu0 0.0
          %296 = vmatpush1.msra.mxu0 0.0
          %297 = vmatprep.subr.mxu0 0.0
          %298 = vmatpush1.msra.mxu0 0.0
          %299 = vmatprep.subr.mxu0 0.0
          %300 = vmatpush1.msra.mxu0 0.0
          %301 = vmatprep.subr.mxu0 0.0
          %302 = vmatpush1.msra.mxu0 0.0
          %303 = vmatprep.subr.mxu0 0.0
          %304 = vmatpush1.msra.mxu0 0.0
          %305 = vmatprep.subr.mxu0 0.0
          %306 = vmatpush1.msra.mxu0 0.0
          %307 = vmatprep.subr.mxu0 0.0
          %308 = vmatpush1.msra.mxu0 0.0
          %309 = vmatprep.subr.mxu0 0.0
          %310 = vmatpush1.msra.mxu0 0.0
          %311 = vmatprep.subr.mxu0 0.0
          %312 = vmatpush1.msra.mxu0 0.0
          %313 = vmatprep.subr.mxu0 %v279
          %314 = vmatpush1.msra.mxu0 %v277
          %315 = vmatprep.subr.mxu0 0.0
          %316 = vmatpush2.msra.mxu0 0.0
          %317 = vmatprep.subr.mxu0 0.0
          %318 = vmatpush2.msra.mxu0 0.0
          %319 = vmatprep.subr.mxu0 0.0
          %320 = vmatpush2.msra.mxu0 0.0
          %321 = vmatprep.subr.mxu0 0.0
          %322 = vmatpush2.msra.mxu0 0.0
          %323 = vmatprep.subr.mxu0 0.0
          %324 = vmatpush2.msra.mxu0 0.0
          %325 = vmatprep.subr.mxu0 0.0
          %326 = vmatpush2.msra.mxu0 0.0
          %327 = vmatprep.subr.mxu0 0.0
          %328 = vmatpush2.msra.mxu0 0.0
          %329 = vmatprep.subr.mxu0 0.0
          %330 = vmatpush2.msra.mxu0 0.0
          %331 = vmatprep.subr.mxu0 0.0
          %332 = vmatpush2.msra.mxu0 0.0
          %333 = vmatprep.subr.mxu0 0.0
          %334 = vmatpush2.msra.mxu0 0.0
          %335 = vmatprep.subr.mxu0 0.0
          %336 = vmatpush2.msra.mxu0 0.0
          %337 = vmatprep.subr.mxu0 0.0
          %338 = vmatpush2.msra.mxu0 0.0
          %339 = vmatprep.subr.mxu0 0.0
          %340 = vmatpush2.msra.mxu0 0.0
          %341 = vmatprep.subr.mxu0 0.0
          %342 = vmatpush2.msra.mxu0 0.0
          %343 = vmatprep.subr.mxu0 0.0
          %344 = vmatpush2.msra.mxu0 0.0
          %345 = vmatprep.subr.mxu0 0.0
          %346 = vmatpush2.msra.mxu0 0.0
          %347 = vmatprep.mubr.f32.mxu0 0.0
          %348 = vmatmul.mubr.f32.gmra.mxu0 %v275
          %v349 = vpop.f32.mrf.mxu0
          %v350 = vadd.f32 %v258, %v349
          %v351 = vpop.f32.mrf.mxu0
          %v352 = vadd.f32 %v262, %v351
          %353 = vdwg.mxu0
          %354 = vmatprep.subr.mxu0 0.0
          %355 = vmatpush1.msra.mxu0 0.0
          %356 = vmatprep.subr.mxu0 0.0
          %357 = vmatpush1.msra.mxu0 0.0
          %358 = vmatprep.subr.mxu0 0.0
          %359 = vmatpush1.msra.mxu0 0.0
          %360 = vmatprep.subr.mxu0 0.0
          %361 = vmatpush1.msra.mxu0 0.0
          %362 = vmatprep.subr.mxu0 0.0
          %363 = vmatpush1.msra.mxu0 0.0
          %364 = vmatprep.subr.mxu0 0.0
          %365 = vmatpush1.msra.mxu0 0.0
          %366 = vmatprep.subr.mxu0 0.0
          %367 = vmatpush1.msra.mxu0 0.0
          %368 = vmatprep.subr.mxu0 0.0
          %369 = vmatpush1.msra.mxu0 0.0
          %370 = vmatprep.subr.mxu0 0.0
          %371 = vmatpush1.msra.mxu0 0.0
          %372 = vmatprep.subr.mxu0 0.0
          %373 = vmatpush1.msra.mxu0 0.0
          %374 = vmatprep.subr.mxu0 0.0
          %375 = vmatpush1.msra.mxu0 0.0
          %376 = vmatprep.subr.mxu0 0.0
          %377 = vmatpush1.msra.mxu0 0.0
          %378 = vmatprep.subr.mxu0 0.0
          %379 = vmatpush1.msra.mxu0 0.0
          %380 = vmatprep.subr.mxu0 0.0
          %381 = vmatpush1.msra.mxu0 0.0
          %382 = vmatprep.subr.mxu0 0.0
          %383 = vmatpush1.msra.mxu0 0.0
          %384 = vmatprep.subr.mxu0 0.0
          %385 = vmatpush1.msra.mxu0 %v281
          %386 = vmatprep.subr.mxu0 0.0
          %387 = vmatpush2.msra.mxu0 0.0
          %388 = vmatprep.subr.mxu0 0.0
          %389 = vmatpush2.msra.mxu0 0.0
          %390 = vmatprep.subr.mxu0 0.0
          %391 = vmatpush2.msra.mxu0 0.0
          %392 = vmatprep.subr.mxu0 0.0
          %393 = vmatpush2.msra.mxu0 0.0
          %394 = vmatprep.subr.mxu0 0.0
          %395 = vmatpush2.msra.mxu0 0.0
          %396 = vmatprep.subr.mxu0 0.0
          %397 = vmatpush2.msra.mxu0 0.0
          %398 = vmatprep.subr.mxu0 0.0
          %399 = vmatpush2.msra.mxu0 0.0
          %400 = vmatprep.subr.mxu0 0.0
          %401 = vmatpush2.msra.mxu0 0.0
          %402 = vmatprep.subr.mxu0 0.0
          %403 = vmatpush2.msra.mxu0 0.0
          %404 = vmatprep.subr.mxu0 0.0
          %405 = vmatpush2.msra.mxu0 0.0
          %406 = vmatprep.subr.mxu0 0.0
          %407 = vmatpush2.msra.mxu0 0.0
          %408 = vmatprep.subr.mxu0 0.0
          %409 = vmatpush2.msra.mxu0 0.0
          %410 = vmatprep.subr.mxu0 0.0
          %411 = vmatpush2.msra.mxu0 0.0
          %412 = vmatprep.subr.mxu0 0.0
          %413 = vmatpush2.msra.mxu0 0.0
          %414 = vmatprep.subr.mxu0 0.0
          %415 = vmatpush2.msra.mxu0 0.0
          %416 = vmatprep.subr.mxu0 0.0
          %417 = vmatpush2.msra.mxu0 0.0
          %418 = vmatprep.mubr.f32.mxu0 0.0
          %419 = vmatmul.mubr.f32.gmra.mxu0 %v275
          %v420 = vpop.f32.mrf.mxu0
          %v421 = vadd.f32 %v266, %v420
          %v422 = vpop.f32.mrf.mxu0
          %423 = vdwg.mxu0
          %v427 = vcombine.low %v350, %v352
          %v429 = vunpack.c.l.s4 1983009808
          %v430 = vunpack.c.0.s8 %v429
          %v431 = vlaneseq
          %v432 = vshrl.u32 %v431, 7
          %v433 = vsub.s32 %v430, %v432
          %v434 = vrot.slane %v427, %v433
          %v436 = vunpack.c.l.s4 1983009808
          %v437 = vunpack.c.0.s8 %v436
          %v438 = vlaneseq
          %v439 = vshrl.u32 %v438, 7
          %v440 = vsub.s32 %v437, %v439
          %v441 = vrot.slane %v421, %v440
          %v442 = vcombine.low %v434, %v441
          %444 = vst [vmem:[#allocation8] sm:$0x3f] %v442
        $region48: #{tpu_custom_call.1} parent=31 // pred_fallthru
          _
        // Predicated region
        $region49: #{tpu_custom_call.1} parent=31 // pred_check
          %p445 = pneg %p119
        $region50: #{tpu_custom_call.1} parent=31 // pred_check_branch
          %447 = sbr.rel (%p445) target = $region52
        $region51: #{tpu_custom_call.1} parent=31 // pred_region
          %s449 = ssub.s32 96, 96
          %450 = vsyncadd [#allocation5], %s449
          %s451 = smul.addr %s23, 3
          %s452 = smul.addr %s451, 32
          %s453 = scalar_lea.hbm %s3, %s452
          %s455 = sshll.u32 [#allocation8], 4
          %s456 = int_to_ptr.vmem [resolvable:$true] %s455
          %458 = dma.vmem_to_hbm [thread:$0]  %s456, 96, %s453, [#allocation5]
        $region52: #{tpu_custom_call.1} parent=31 // pred_fallthru
          _
        // Predicated region
        $region53: #{tpu_custom_call.1} parent=31 // pred_check
          %p459 = pneg %p119
        $region54: #{tpu_custom_call.1} parent=31 // pred_check_branch
          %461 = sbr.rel (%p459) target = $region56
        $region55: #{tpu_custom_call.1} parent=31 // pred_region
          %462 = dma.done [#allocation5], 96
        $region56: #{tpu_custom_call.1} parent=31 // pred_fallthru
          _
      $region32: #{tpu_custom_call.1} parent=5 // pred_fallthru
        _
      %p463 = scmp.le.s32.totalorder 2, %s14
      // Predicated region
      $region57: #{tpu_custom_call.1} parent=5 // pred_check
        %p464 = pneg %p463
      $region58: #{tpu_custom_call.1} parent=5 // pred_check_branch
        %466 = sbr.rel (%p464) target = $region60
      $region59: #{tpu_custom_call.1} parent=5 // pred_region
        %s467 = ssub.s32 %s14, 2
      $region60: #{tpu_custom_call.1} parent=5 // pred_fallthru
        _
    $region6: #{tpu_custom_call.1} parent=1 // loop_footer
      %s18 = sadd.s32 1, %s14
    $region7: #{tpu_custom_call.1} parent=1 // loop_footer_branch
      %13 = sbr.rel target = $region3
    $region8: #{tpu_custom_call.1} parent=1 // loop_exit
      _
    %468 = vsyncpa [#allocation4], 1
    %s469 = scalar_lea.sflag [#allocation4], 1
    %470 = vsyncpa %s469, 1
    %471 = vsyncpa [#allocation7], 1
    %472 = vsyncpa [#allocation5], 1
    %s473 = scalar_lea.sflag [#allocation5], 1
    %474 = vsyncpa %s473, 1

</llo_original>
